<compile_context>
chip_gen: v5e
topology: v5e:2x2
jax: 0.10.0
libtpu: 0.0.40
codegen_flags: <defaults>
</compile_context>

<pallas_src>
import functools

import jax
import jax.numpy as jnp
from jax.experimental import pallas as pl
from jax.experimental.pallas import tpu as pltpu

_LANES = 128
_SUBLANES = 8
_DEFAULT_BLOCK_ROWS = 1024          # 1024 x 128 f32 tile = 512 KiB per grid step
_NUM_CHUNKS = 2                     # leading "parallel" axis (engages both TCs on v7x)
_VMEM_LIMIT = 32 * 1024 * 1024      # safe scoped-VMEM limit on v5e / v6e / v7x


def _focal_elem(x, t, alpha, gamma):
    """Elementwise focal loss, computed in f32 regardless of input dtype."""
    x = x.astype(jnp.float32)
    t = t.astype(jnp.float32)
    # numerically stable BCE-with-logits
    z = jnp.exp(-jnp.abs(x))                                   # EUP
    bce = jnp.maximum(x, 0.0) - x * t + jnp.log1p(z)           # VPU + EUP
    pt = jnp.exp(-bce)                                         # EUP
    omp = 1.0 - pt
    g = float(gamma)
    if g.is_integer() and g >= 0:
        gi = int(g)
        if gi == 0:
            w = jnp.ones_like(omp)
        else:
            w = omp
            for _ in range(gi - 1):                            # gamma==2 -> one VPU multiply
                w = w * omp
    else:
        # general (non-integer) gamma; clamp base for safety against log(<0)
        w = jnp.power(jnp.maximum(omp, 0.0), g)
    return float(alpha) * w * bce


def _focal_reduce_kernel(x_ref, t_ref, out_ref, acc_ref, *,
                         alpha, gamma, n, block_rows, tiles_per_chunk, need_mask):
    """grid = (chunks [parallel], tiles_per_chunk [arbitrary]); accumulate (8,128) partials."""
    c = pl.program_id(0)
    i = pl.program_id(1)

    @pl.when(i == 0)
    def _():
        acc_ref[...] = jnp.zeros_like(acc_ref)

    fl = _focal_elem(x_ref[...], t_ref[...], alpha, gamma)

    if need_mask:
        # zero out padded tail elements (global flat index >= n); pure VPU work
        tile_idx = c * tiles_per_chunk + i
        base = tile_idx * (block_rows * _LANES)
        row = jax.lax.broadcasted_iota(jnp.int32, (block_rows, _LANES), 0)
        col = jax.lax.broadcasted_iota(jnp.int32, (block_rows, _LANES), 1)
        fl = jnp.where(base + row * _LANES + col < n, fl, 0.0)

    # vector accumulate: fold the block's vregs into one (8,128) partial (VPU adds only)
    acc_ref[...] += fl.reshape(block_rows // _SUBLANES, _SUBLANES, _LANES).sum(axis=0)

    @pl.when(i == tiles_per_chunk - 1)
    def _():
        out_ref[0, :, :] = acc_ref[...]


def _focal_none_kernel(x_ref, t_ref, out_ref, *, alpha, gamma):
    out_ref[...] = _focal_elem(x_ref[...], t_ref[...], alpha, gamma)


def _pad_and_tile(v, n_rows_pad):
    n = v.shape[0]
    pad = n_rows_pad * _LANES - n
    return jnp.pad(v, (0, pad)).reshape(n_rows_pad, _LANES)


def focal_loss(inputs, targets, *, alpha=1.0, gamma=2.0, reduction="mean",
               block_rows=_DEFAULT_BLOCK_ROWS):
    """JAX/Pallas equivalent of FocalLoss.forward."""
    # --- squeeze logic (glue, plain JAX) ---
    if inputs.ndim > targets.ndim:
        inputs = jnp.squeeze(inputs, axis=-1)
    elif targets.ndim > inputs.ndim:
        targets = jnp.squeeze(targets, axis=-1)
    if inputs.shape != targets.shape:
        raise ValueError(
            f"Target size ({targets.shape}) must be the same as input size ({inputs.shape})"
        )

    orig_shape = inputs.shape
    x = inputs.reshape(-1)
    t = targets.reshape(-1)
    # keep native floating dtypes (upcast happens in-kernel); only fix non-float inputs
    if not jnp.issubdtype(x.dtype, jnp.floating):
        x = x.astype(jnp.float32)
    if not jnp.issubdtype(t.dtype, jnp.floating):
        t = t.astype(jnp.float32)
    n = x.shape[0]

    # rows of 128 lanes, rounded up to a sublane multiple; shrink block for tiny inputs
    n_rows = pl.cdiv(n, _LANES)
    n_rows = pl.cdiv(n_rows, _SUBLANES) * _SUBLANES
    block_rows = max(_SUBLANES, (min(block_rows, n_rows) // _SUBLANES) * _SUBLANES)

    if reduction in ("mean", "sum"):
        total_tiles = pl.cdiv(n_rows, block_rows)
        num_chunks = min(_NUM_CHUNKS, total_tiles)
        tiles_per_chunk = pl.cdiv(total_tiles, num_chunks)
        n_rows_pad = num_chunks * tiles_per_chunk * block_rows
        pad = n_rows_pad * _LANES - n
        x2 = _pad_and_tile(x, n_rows_pad)
        t2 = _pad_and_tile(t, n_rows_pad)

        tile_spec = pl.BlockSpec((block_rows, _LANES),
                                 lambda c, i: (c * tiles_per_chunk + i, 0))
        kernel = functools.partial(
            _focal_reduce_kernel,
            alpha=float(alpha), gamma=float(gamma), n=n,
            block_rows=block_rows, tiles_per_chunk=tiles_per_chunk,
            need_mask=pad > 0,
        )
        partials = pl.pallas_call(
            kernel,
            out_shape=jax.ShapeDtypeStruct((num_chunks, _SUBLANES, _LANES), jnp.float32),
            grid_spec=pltpu.PrefetchScalarGridSpec(
                num_scalar_prefetch=0,
                grid=(num_chunks, tiles_per_chunk),
                in_specs=[tile_spec, tile_spec],
                out_specs=pl.BlockSpec((1, _SUBLANES, _LANES), lambda c, i: (c, 0, 0)),
                scratch_shapes=[pltpu.VMEM((_SUBLANES, _LANES), jnp.float32)],
            ),
            compiler_params=pltpu.CompilerParams(
                dimension_semantics=("parallel", "arbitrary"),
                vmem_limit_bytes=_VMEM_LIMIT,
            ),
        )(x2, t2)
        total = jnp.sum(partials)  # tiny final cross-lane reduce, once, outside the kernel
        if reduction == "mean":
            total = total / float(n)
        return total
    else:  # reduction == 'none' -> per-element focal loss
        total_tiles = pl.cdiv(n_rows, block_rows)
        n_rows_pad = total_tiles * block_rows
        x2 = _pad_and_tile(x, n_rows_pad)
        t2 = _pad_and_tile(t, n_rows_pad)
        tile_spec = pl.BlockSpec((block_rows, _LANES), lambda i: (i, 0))
        out = pl.pallas_call(
            functools.partial(_focal_none_kernel, alpha=float(alpha), gamma=float(gamma)),
            out_shape=jax.ShapeDtypeStruct((n_rows_pad, _LANES), jnp.float32),
            grid_spec=pltpu.PrefetchScalarGridSpec(
                num_scalar_prefetch=0,
                grid=(total_tiles,),
                in_specs=[tile_spec, tile_spec],
                out_specs=tile_spec,
            ),
            compiler_params=pltpu.CompilerParams(
                dimension_semantics=("parallel",),
                vmem_limit_bytes=_VMEM_LIMIT,
            ),
        )(x2, t2)
        return out.reshape(-1)[:n].reshape(orig_shape)


def _reference_elem(inputs, targets, alpha=1.0, gamma=2.0):
    x = jnp.squeeze(inputs, axis=-1).astype(jnp.float32)
    t = targets.astype(jnp.float32)
    bce = jnp.maximum(x, 0.0) - x * t + jnp.log1p(jnp.exp(-jnp.abs(x)))
    pt = jnp.exp(-bce)
    return alpha * (1.0 - pt) ** gamma * bce


if __name__ == "__main__":
    key = jax.random.PRNGKey(0)
    k1, k2 = jax.random.split(key)
    N = 2000  # not a tile multiple on purpose (exercises padding + in-kernel masking)
    inputs = jax.random.normal(k1, (N, 1), dtype=jnp.float32) * 2.0        # logits
    targets = jax.random.bernoulli(k2, 0.3, (N,)).astype(jnp.float32)      # binary labels

    ref_elem = _reference_elem(inputs, targets)

    # mean reduction (default path)
    loss_mean = jax.block_until_ready(
        focal_loss(inputs, targets, alpha=1.0, gamma=2.0, reduction="mean"))
    assert jnp.allclose(loss_mean, jnp.mean(ref_elem), rtol=1e-5, atol=1e-6), \
        (loss_mean, jnp.mean(ref_elem))

    # sum reduction with a tiny block size to exercise the multi-tile, 2-chunk path
    loss_sum = jax.block_until_ready(
        focal_loss(inputs, targets, alpha=1.0, gamma=2.0, reduction="sum", block_rows=8))
    assert jnp.allclose(loss_sum, jnp.sum(ref_elem), rtol=1e-5, atol=1e-4), \
        (loss_sum, jnp.sum(ref_elem))

    # 'none' reduction (elementwise kernel)
    loss_none = jax.block_until_ready(
        focal_loss(inputs, targets, alpha=1.0, gamma=2.0, reduction="none"))
    assert loss_none.shape == (N,)
    assert jnp.allclose(loss_none, ref_elem, rtol=1e-5, atol=1e-6)

    print("KERNEL_OK")
</pallas_src>

<mosaic_0001>
module attributes {stable_mosaic.version = 11 : i64} {
  func.func @_focal_reduce_kernel(%arg0: i32, %arg1: i32, %arg2: memref<16x128xf32, #tpu.memory_space<vmem>>, %arg3: memref<16x128xf32, #tpu.memory_space<vmem>>, %arg4: memref<1x8x128xf32, #tpu.memory_space<vmem>>, %arg5: memref<8x128xf32, #tpu.memory_space<vmem>>) attributes {dimension_semantics = [#tpu.dimension_semantics<parallel>, #tpu.dimension_semantics<arbitrary>], iteration_bounds = array<i64: 1, 1>, scalar_prefetch = 0 : i64, scratch_operands = 1 : i64, tpu.core_type = #tpu.core_type<tc>, window_params = [{transform_indices = @transform_0, window_bounds = array<i64: 16, 128>}, {transform_indices = @transform_1, window_bounds = array<i64: 16, 128>}, {transform_indices = @transform_2, window_bounds = array<i64: 1, 8, 128>}]} {
    %c0_i32 = arith.constant 0 : i32
    %0 = arith.cmpi eq, %arg1, %c0_i32 : i32
    %1 = arith.extui %0 : i1 to i32
    %c0_i32_0 = arith.constant 0 : i32
    %2 = arith.cmpi ne, %1, %c0_i32_0 : i32
    scf.if %2 {
      %cst_16 = arith.constant 0.000000e+00 : f32
      %46 = vector.broadcast %cst_16 : f32 to vector<8x128xf32>
      %c0_17 = arith.constant 0 : index
      %c0_18 = arith.constant 0 : index
      %47 = vector.load %arg5[%c0_17, %c0_18] : memref<8x128xf32, #tpu.memory_space<vmem>>, vector<8x128xf32>
      tpu.vector_store %arg5[%c0_17, %c0_18], %46 {strides = array<i32>} : memref<8x128xf32, #tpu.memory_space<vmem>>, vector<8x128xf32>,
    } else {
    }
    %c0 = arith.constant 0 : index
    %c0_1 = arith.constant 0 : index
    %3 = vector.load %arg2[%c0, %c0_1] : memref<16x128xf32, #tpu.memory_space<vmem>>, vector<16x128xf32>
    %c0_2 = arith.constant 0 : index
    %c0_3 = arith.constant 0 : index
    %4 = vector.load %arg3[%c0_2, %c0_3] : memref<16x128xf32, #tpu.memory_space<vmem>>, vector<16x128xf32>
    %5 = math.absf %3 : vector<16x128xf32>
    %cst = arith.constant 0.000000e+00 : f32
    %6 = vector.broadcast %cst : f32 to vector<16x128xf32>
    %7 = arith.subf %6, %5 : vector<16x128xf32>
    %8 = math.exp %7 : vector<16x128xf32>
    %cst_4 = arith.constant 0.000000e+00 : f32
    %9 = vector.broadcast %cst_4 : f32 to vector<16x128xf32>
    %10 = arith.maximumf %3, %9 : vector<16x128xf32>
    %11 = arith.mulf %3, %4 : vector<16x128xf32>
    %12 = arith.subf %10, %11 : vector<16x128xf32>
    %13 = math.log1p %8 : vector<16x128xf32>
    %14 = arith.addf %12, %13 : vector<16x128xf32>
    %cst_5 = arith.constant 0.000000e+00 : f32
    %15 = vector.broadcast %cst_5 : f32 to vector<16x128xf32>
    %16 = arith.subf %15, %14 : vector<16x128xf32>
    %17 = math.exp %16 : vector<16x128xf32>
    %cst_6 = arith.constant 1.000000e+00 : f32
    %18 = vector.broadcast %cst_6 : f32 to vector<16x128xf32>
    %19 = arith.subf %18, %17 : vector<16x128xf32>
    %20 = arith.mulf %19, %19 : vector<16x128xf32>
    %cst_7 = arith.constant 1.000000e+00 : f32
    %21 = vector.broadcast %cst_7 : f32 to vector<16x128xf32>
    %22 = arith.mulf %21, %20 : vector<16x128xf32>
    %23 = arith.mulf %22, %14 : vector<16x128xf32>
    %c1_i32 = arith.constant 1 : i32
    %24 = arith.muli %arg0, %c1_i32 : i32
    %25 = arith.addi %24, %arg1 : i32
    %c2048_i32 = arith.constant 2048 : i32
    %26 = arith.muli %25, %c2048_i32 : i32
    %27 = tpu.iota {dimensions = array<i32: 0>} : vector<16x128xi32>
    %28 = tpu.iota {dimensions = array<i32: 1>} : vector<16x128xi32>
    %c128_i32 = arith.constant 128 : i32
    %29 = vector.broadcast %c128_i32 : i32 to vector<16x128xi32>
    %30 = arith.muli %27, %29 : vector<16x128xi32>
    %31 = vector.broadcast %26 : i32 to vector<16x128xi32>
    %32 = arith.addi %31, %30 : vector<16x128xi32>
    %33 = arith.addi %32, %28 : vector<16x128xi32>
    %c2000_i32 = arith.constant 2000 : i32
    %34 = vector.broadcast %c2000_i32 : i32 to vector<16x128xi32>
    %35 = arith.cmpi slt, %33, %34 : vector<16x128xi32>
    %cst_8 = arith.constant 0.000000e+00 : f32
    %36 = vector.broadcast %cst_8 : f32 to vector<16x128xf32>
    %37 = arith.select %35, %23, %36 : vector<16x128xi1>, vector<16x128xf32>
    %c0_9 = arith.constant 0 : index
    %c0_10 = arith.constant 0 : index
    %38 = vector.load %arg5[%c0_9, %c0_10] : memref<8x128xf32, #tpu.memory_space<vmem>>, vector<8x128xf32>
    %39 = vector.shape_cast %37 : vector<16x128xf32> to vector<2x8x128xf32>
    %cst_11 = arith.constant dense<0.000000e+00> : vector<8x128xf32>
    %40 = vector.multi_reduction <add>, %39, %cst_11 [0] : vector<2x8x128xf32> to vector<8x128xf32>
    %41 = arith.addf %38, %40 : vector<8x128xf32>
    %c0_12 = arith.constant 0 : index
    %c0_13 = arith.constant 0 : index
    %42 = vector.load %arg5[%c0_12, %c0_13] : memref<8x128xf32, #tpu.memory_space<vmem>>, vector<8x128xf32>
    tpu.vector_store %arg5[%c0_12, %c0_13], %41 {strides = array<i32>} : memref<8x128xf32, #tpu.memory_space<vmem>>, vector<8x128xf32>,
    %c0_i32_14 = arith.constant 0 : i32
    %43 = arith.cmpi eq, %arg1, %c0_i32_14 : i32
    %44 = arith.extui %43 : i1 to i32
    %c0_i32_15 = arith.constant 0 : i32
    %45 = arith.cmpi ne, %44, %c0_i32_15 : i32
    scf.if %45 {
      %c0_16 = arith.constant 0 : index
      %c0_17 = arith.constant 0 : index
      %46 = vector.load %arg5[%c0_16, %c0_17] : memref<8x128xf32, #tpu.memory_space<vmem>>, vector<8x128xf32>
      %c0_18 = arith.constant 0 : index
      %c0_19 = arith.constant 0 : index
      %c0_20 = arith.constant 0 : index
      %47 = vector.load %arg4[%c0_18, %c0_19, %c0_20] : memref<1x8x128xf32, #tpu.memory_space<vmem>>, vector<1x8x128xf32>
      %48 = vector.shape_cast %47 : vector<1x8x128xf32> to vector<8x128xf32>
      %49 = vector.shape_cast %46 : vector<8x128xf32> to vector<1x8x128xf32>
      tpu.vector_store %arg4[%c0_18, %c0_19, %c0_20], %49 {strides = array<i32>} : memref<1x8x128xf32, #tpu.memory_space<vmem>>, vector<1x8x128xf32>,
    } else {
    }
    return
  }
  func.func @transform_0(%arg0: i32, %arg1: i32) -> (i32, i32) {
    %c1_i32 = arith.constant 1 : i32
    %0 = arith.muli %arg0, %c1_i32 : i32
    %1 = arith.addi %0, %arg1 : i32
    %c0_i32 = arith.constant 0 : i32
    %c0_i32_0 = arith.constant 0 : i32
    return %1, %c0_i32 : i32, i32
  }
  func.func @transform_1(%arg0: i32, %arg1: i32) -> (i32, i32) {
    %c1_i32 = arith.constant 1 : i32
    %0 = arith.muli %arg0, %c1_i32 : i32
    %1 = arith.addi %0, %arg1 : i32
    %c0_i32 = arith.constant 0 : i32
    %c0_i32_0 = arith.constant 0 : i32
    return %1, %c0_i32 : i32, i32
  }
  func.func @transform_2(%arg0: i32, %arg1: i32) -> (i32, i32, i32) {
    %c0_i32 = arith.constant 0 : i32
    %c0_i32_0 = arith.constant 0 : i32
    %c0_i32_1 = arith.constant 0 : i32
    return %arg0, %c0_i32, %c0_i32_0 : i32, i32, i32
  }
}

</mosaic_0001>

<llo_original>
// kernel: tpu_custom_call.1
$region0: #{tpu_custom_call.1}
  #allocation0 [shape = 'u32[]', space=smem, size = 0x4, offset = 0x4, fixed_abs, tag = 'smem constant byte address 0x4 - core index']
  #allocation1 [shape = 'u32[72,128]{1,0:T(1,128)}', space=vmem, size = 0x9000, scoped, tag = 'internal scratch']
  #allocation2 [shape = 'f32[8,128]{1,0:T(8,128)}', space=vmem, size = 0x1000, scoped, tag = 'scratch operand']
  %s0 = inlined_call_operand.hbm [shape: f32[16,128], index: 0, kind: input, shape index: {}]
  %s1 = inlined_call_operand.hbm [shape: f32[16,128], index: 1, kind: input, shape index: {}]
  %s2 = inlined_call_operand.hbm [shape: f32[1,8,128], index: 2, kind: output, shape index: {}]
  %s3 = sld [smem:[#allocation0]]
  $region34: #{tpu_custom_call.1} parent=0
    _
  %s5 = ssub.s32 1, %s3
  %s6 = scalar_select 0, %s5, %s3
  $region1: #{tpu_custom_call.1} parent=0
    #allocation3 [shape = 'u8[8192]{0}', space=vmem, size = 0x2000, scoped, tag = 'input window, operand 0, single buffered']
    #allocation4 [shape = 's32[1]{0}', space=sflag, size = 0x4, scoped, tag = 'scoped memory for tpu_custom_call.1']
    #allocation5 [shape = 's32[1]{0}', space=sflag, size = 0x4, scoped, tag = 'scoped memory for tpu_custom_call.1']
    #allocation6 [shape = 'u8[8192]{0}', space=vmem, size = 0x2000, scoped, tag = 'input window, operand 1, single buffered']
    #allocation7 [shape = 's32[1]{0}', space=sflag, size = 0x4, scoped, tag = 'scoped memory for tpu_custom_call.1']
    #allocation8 [shape = 'u8[4096]{0}', space=vmem, size = 0x1000, scoped, tag = 'output window, operand 0, single buffered']
    %7 = vsyncpa [#allocation4], 0
    %8 = vsyncpa [#allocation7], 0
    %9 = vsyncpa [#allocation5], 0
    // Predicated region
    $region2: #{tpu_custom_call.1} parent=1 // pred_check
      _
    $region3: #{tpu_custom_call.1} parent=1 // pred_check_branch
      %11 = sbr.rel (0) target = $region5
    $region4: #{tpu_custom_call.1} parent=1 // pred_region
      %s12 = sadd.s32 0, 0
      %s13 = smul.u32 2, %s12
      %15 = vsyncadd [#allocation4], 0
      %s16 = smul.addr %s13, 8
      %s17 = scalar_lea.hbm %s0, %s16
      %s18 = sshll.u32 %s17, 4
      %s19 = int_to_ptr.hbm [resolvable:$true] %s18
      %s20 = sshll.u32 [#allocation3], 4
      %s21 = int_to_ptr.vmem [resolvable:$true] %s20
      %26 = dma.hbm_to_vmem [thread:$0]  %s19, 256, %s21, [#allocation4], 128, 128, 8
    $region5: #{tpu_custom_call.1} parent=1 // pred_fallthru
      _
    // Predicated region
    $region6: #{tpu_custom_call.1} parent=1 // pred_check
      _
    $region7: #{tpu_custom_call.1} parent=1 // pred_check_branch
      %28 = sbr.rel (0) target = $region9
    $region8: #{tpu_custom_call.1} parent=1 // pred_region
      %s29 = sadd.s32 0, 0
      %s30 = smul.u32 2, %s29
      %32 = vsyncadd [#allocation7], 0
      %s33 = smul.addr %s30, 8
      %s34 = scalar_lea.hbm %s1, %s33
      %s35 = sshll.u32 %s34, 4
      %s36 = int_to_ptr.hbm [resolvable:$true] %s35
      %s37 = sshll.u32 [#allocation6], 4
      %s38 = int_to_ptr.vmem [resolvable:$true] %s37
      %43 = dma.hbm_to_vmem [thread:$0]  %s36, 256, %s38, [#allocation7], 128, 128, 8
    $region9: #{tpu_custom_call.1} parent=1 // pred_fallthru
      _
    // Predicated region
    $region10: #{tpu_custom_call.1} parent=1 // pred_check
      _
    $region11: #{tpu_custom_call.1} parent=1 // pred_check_branch
      %45 = sbr.rel (0) target = $region13
    $region12: #{tpu_custom_call.1} parent=1 // pred_region
      %47 = dma.done [#allocation4], 256
    $region13: #{tpu_custom_call.1} parent=1 // pred_fallthru
      _
    // Predicated region
    $region14: #{tpu_custom_call.1} parent=1 // pred_check
      _
    $region15: #{tpu_custom_call.1} parent=1 // pred_check_branch
      %49 = sbr.rel (0) target = $region17
    $region16: #{tpu_custom_call.1} parent=1 // pred_region
      %51 = dma.done [#allocation7], 256
    $region17: #{tpu_custom_call.1} parent=1 // pred_fallthru
      _
    %s52 = sadd.s32 0, 0
    %s53 = smul.u32 2, %s52
    %s54 = sadd.s32 0, 0
    %s55 = smul.u32 2, %s54
    %p56 = scmp.eq.s32.totalorder 0, 0
    // Predicated region
    $region18: #{tpu_custom_call.1} parent=1 // pred_check
      %p57 = pneg %p56
    $region19: #{tpu_custom_call.1} parent=1 // pred_check_branch
      %59 = sbr.rel (%p57) target = $region21
    $region20: #{tpu_custom_call.1} parent=1 // pred_region
      %60 = vst [vmem:[#allocation2] sm:$0xff] 0.0
    $region21: #{tpu_custom_call.1} parent=1 // pred_fallthru
      _
    %v61 = vld [vmem:[#allocation3] sm:$0xff]
    %v62 = vld [vmem:[#allocation3 + $0x8] sm:$0xff]
    %v63 = vld [vmem:[#allocation6] sm:$0xff]
    %v64 = vld [vmem:[#allocation6 + $0x8] sm:$0xff]
    %v65 = vand.u32 2147483647, %v61
    %v66 = vand.u32 2147483647, %v62
    %v67 = vsub.f32 0.0, %v65
    %v68 = vsub.f32 0.0, %v66
    %v69 = vmul.f32 %v67, 1.442695
    %v70 = vpow.pop %v69
    %v71 = vmul.f32 %v68, 1.442695
    %v72 = vpow.pop %v71
    %v73 = vmax.f32 %v61, 0.0
    %v74 = vmax.f32 %v62, 0.0
    %v75 = vmul.f32 %v61, %v63
    %v76 = vmul.f32 %v62, %v64
    %v77 = vsub.f32 %v73, %v75
    %v78 = vsub.f32 %v74, %v76
    %v79 = vadd.f32 %v70, 1.0
    %v80 = vlog2.pop %v79
    %v81 = vmul.f32 %v80, 0.6931472
    %v82 = vmul.f32 -0.5, %v70
    %v83 = vadd.f32 %v82, 1.0
    %v84 = vmul.f32 %v83, %v70
    %v85 = vand.u32 2147483647, %v70
    %vm86 = vcmp.lt.f32.partialorder %v85, 0.0004427343
    %v87 = vsel %vm86, %v84, %v81
    %v88 = vadd.f32 %v72, 1.0
    %v89 = vlog2.pop %v88
    %v90 = vmul.f32 %v89, 0.6931472
    %v91 = vmul.f32 -0.5, %v72
    %v92 = vadd.f32 %v91, 1.0
    %v93 = vmul.f32 %v92, %v72
    %v94 = vand.u32 2147483647, %v72
    %vm95 = vcmp.lt.f32.partialorder %v94, 0.0004427343
    %v96 = vsel %vm95, %v93, %v90
    %v97 = vadd.f32 %v77, %v87
    %v98 = vadd.f32 %v78, %v96
    %v99 = vsub.f32 0.0, %v97
    %v100 = vsub.f32 0.0, %v98
    %v101 = vmul.f32 %v99, 1.442695
    %v102 = vpow.pop %v101
    %v103 = vmul.f32 %v100, 1.442695
    %v104 = vpow.pop %v103
    %v105 = vsub.f32 1.0, %v102
    %v106 = vsub.f32 1.0, %v104
    %v107 = vmul.f32 %v105, %v105
    %v108 = vmul.f32 %v106, %v106
    %v109 = vmul.f32 %v107, %v97
    %v110 = vmul.f32 %v108, %v98
    %s111 = sadd.s32 0, 0
    %s112 = smul.u32 %s111, 2048
    %v113 = vlaneseq
    %v114 = vshrl.u32 %v113, 7
    %v115 = vadd.s32 %v114, 8
    %v116 = vlaneseq
    %v117 = vand.u32 %v116, 127
    %v118 = vmul.u32 %v114, 128
    %v119 = vmul.u32 %v115, 128
    %v120 = vstv %s112
    %v121 = vadd.s32 %v120, %v118
    %v122 = vadd.s32 %v120, %v119
    %v123 = vadd.s32 %v121, %v117
    %v124 = vadd.s32 %v122, %v117
    %vm125 = vcmp.lt.s32.totalorder %v123, 2000
    %vm126 = vcmp.lt.s32.totalorder %v124, 2000
    %v127 = vsel %vm125, %v109, 0.0
    %v128 = vsel %vm126, %v110, 0.0
    %v129 = vld [vmem:[#allocation2] sm:$0xff]
    %v130 = vadd.f32 %v127, %v128
    %v131 = vadd.f32 %v129, %v130
    %132 = vst [vmem:[#allocation2] sm:$0xff] %v131
    // Predicated region
    $region22: #{tpu_custom_call.1} parent=1 // pred_check
      %p133 = pneg %p56
    $region23: #{tpu_custom_call.1} parent=1 // pred_check_branch
      %135 = sbr.rel (%p133) target = $region25
    $region24: #{tpu_custom_call.1} parent=1 // pred_region
      %v136 = vld [vmem:[#allocation2] sm:$0xff]
      %137 = vst [vmem:[#allocation8] sm:$0xff] %v136
    $region25: #{tpu_custom_call.1} parent=1 // pred_fallthru
      _
    // Predicated region
    $region26: #{tpu_custom_call.1} parent=1 // pred_check
      _
    $region27: #{tpu_custom_call.1} parent=1 // pred_check_branch
      %139 = sbr.rel (0) target = $region29
    $region28: #{tpu_custom_call.1} parent=1 // pred_region
      %141 = vsyncadd [#allocation5], 0
      %s143 = sshll.u32 [#allocation8], 4
      %s144 = int_to_ptr.vmem [resolvable:$true] %s143
      %s145 = sshll.u32 %s2, 4
      %s146 = int_to_ptr.hbm [resolvable:$true] %s145
      %148 = dma.vmem_to_hbm [thread:$0]  %s144, 128, %s146, [#allocation5]
    $region29: #{tpu_custom_call.1} parent=1 // pred_fallthru
      _
    // Predicated region
    $region30: #{tpu_custom_call.1} parent=1 // pred_check
      _
    $region31: #{tpu_custom_call.1} parent=1 // pred_check_branch
      %150 = sbr.rel (0) target = $region33
    $region32: #{tpu_custom_call.1} parent=1 // pred_region
      %152 = dma.done [#allocation5], 128
    $region33: #{tpu_custom_call.1} parent=1 // pred_fallthru
      _
    %153 = vsyncpa [#allocation4], 1
    %154 = vsyncpa [#allocation7], 1
    %155 = vsyncpa [#allocation5], 1

</llo_original>
